<compile_context>
chip_gen: v5e
topology: v5e:2x2
jax: 0.10.0
libtpu: 0.0.40
codegen_flags: <defaults>
</compile_context>

<pallas_src>
import jax
import jax.numpy as jnp
from jax import lax
from jax.experimental import pallas as pl
from jax.experimental.pallas import tpu as pltpu

_LANE = 128
_SUBLANE = 8


def _mlp_kernel(p_ref, x_ref, o_ref):
    # p_ref : SMEM (12,) f32 = [A1.flat (4), c1 (2), A2.flat (4), c2 (2)]
    #         with A1 = 0.5*W1, c1 = 0.5*b1, A2 = 0.25*W2,
    #         c2 = 0.5*b2 + 0.25*(W2 @ [1,1])   (tanh-folded sigmoid).
    # x_ref / o_ref : VMEM (R, 128) f32, flat interleaved view of (B, 2):
    #         even lanes = feature 0, odd lanes = feature 1 of the same sample.
    x = x_ref[...]                                        # (R, 128)

    # ---- lane-parity setup at (1, 128); broadcasts over sublanes ----
    lane = lax.broadcasted_iota(jnp.int32, (1, _LANE), 1)
    even = (lane & 1) == 0                                # lane holds feature 0
    partner_lane = lane ^ 1                               # lane of the paired feature
    # Convention-proof neighbor pick: decide at runtime which 1-lane rotation
    # lands on lane^1 (feature pairs never straddle the 128-lane boundary).
    take_a = pltpu.roll(lane, 1, 1) == partner_lane       # (1, 128) bool

    def partner(v):                                       # v[:, i] -> v[:, i ^ 1]
        return jnp.where(take_a, pltpu.roll(v, 1, 1), pltpu.roll(v, _LANE - 1, 1))

    # Per-lane folded weights: even lanes compute output feature 0, odd lanes
    # output feature 1.  "own" multiplies the value already in this lane,
    # "oth" multiplies the partner lane's value.
    wo1 = jnp.where(even, p_ref[0], p_ref[3])
    wp1 = jnp.where(even, p_ref[1], p_ref[2])
    cb1 = jnp.where(even, p_ref[4], p_ref[5])
    wo2 = jnp.where(even, p_ref[6], p_ref[9])
    wp2 = jnp.where(even, p_ref[7], p_ref[8])
    cb2 = jnp.where(even, p_ref[10], p_ref[11])

    # Layer 1 + layer 2: VPU FMAs, one EUP tanh per layer per vreg.
    t1 = jnp.tanh(wo1 * x + wp1 * partner(x) + cb1)
    o_ref[...] = 0.5 * jnp.tanh(wo2 * t1 + wp2 * partner(t1) + cb2) + 0.5


def _net_forward(x, w1, b1, w2, b2, *, block_rows=2048):
    """x: (B, 2) f32; w1/w2: (2, 2) PyTorch Linear layout; b1/b2: (2,).

    Returns (B, 2) f32 = sigmoid(sigmoid(x @ w1.T + b1) @ w2.T + b2).
    """
    B, F = x.shape
    assert F == 2 and w1.shape == (2, 2) and w2.shape == (2, 2)

    w1 = w1.astype(jnp.float32)
    b1 = b1.astype(jnp.float32)
    w2 = w2.astype(jnp.float32)
    b2 = b2.astype(jnp.float32)

    # Fold sigmoid(z) = 0.5*tanh(0.5*z) + 0.5 into the 12 scalar parameters
    # (exact algebraic rewrite, done on 12 scalars -> free).
    a1 = 0.5 * w1
    c1 = 0.5 * b1
    a2 = 0.25 * w2
    c2 = 0.5 * b2 + 0.25 * jnp.sum(w2, axis=1)
    params = jnp.concatenate(
        [a1.reshape(-1), c1, a2.reshape(-1), c2]
    ).astype(jnp.float32)

    # Lane-dense flat view of the natural interleaved (B, 2) layout (free reshape).
    flat = x.reshape(-1).astype(jnp.float32)
    n = flat.shape[0]                                    # 2*B, always even
    rows = pl.cdiv(n, _LANE)

    # Block sizing: ~block_rows*512 B per input block; force >= 2 grid steps
    # when there is enough data so v7x can shard the "parallel" axis across
    # its two TensorCores (and 1-TC chips still pipeline DMAs).
    nblk_target = pl.cdiv(rows, block_rows)
    if rows >= 2 * _SUBLANE:
        nblk_target = max(nblk_target, 2)
    R = max(_SUBLANE, pl.cdiv(pl.cdiv(rows, nblk_target), _SUBLANE) * _SUBLANE)
    nblk = pl.cdiv(rows, R)
    rows_p = nblk * R
    total = rows_p * _LANE
    if total != n:
        # Tail-only padding; skipped entirely when B*2 is block-aligned.
        flat = jnp.pad(flat, (0, total - n))
    x2d = flat.reshape(rows_p, _LANE)

    out2d = pl.pallas_call(
        _mlp_kernel,
        out_shape=jax.ShapeDtypeStruct((rows_p, _LANE), jnp.float32),
        grid=(nblk,),
        in_specs=[
            pl.BlockSpec(memory_space=pltpu.MemorySpace.SMEM),   # 12 folded params
            pl.BlockSpec((R, _LANE), lambda i: (i, 0)),          # interleaved acts
        ],
        out_specs=pl.BlockSpec((R, _LANE), lambda i: (i, 0)),
        compiler_params=pltpu.CompilerParams(
            dimension_semantics=("parallel",),
            vmem_limit_bytes=32 * 1024 * 1024,
        ),
    )(params, x2d)

    # Padded tail lanes compute garbage and are sliced off (elementwise kernel).
    return out2d.reshape(-1)[:n].reshape(B, 2)


net_forward = jax.jit(_net_forward, static_argnames=("block_rows",))


if __name__ == "__main__":
    key = jax.random.PRNGKey(0)
    k_w1, k_b1, k_w2, k_b2, k_x = jax.random.split(key, 5)

    # PyTorch nn.Linear(2, 2) default init: U(-1/sqrt(2), 1/sqrt(2)).
    bound = 1.0 / jnp.sqrt(2.0)
    w1 = jax.random.uniform(k_w1, (2, 2), jnp.float32, -bound, bound)
    b1 = jax.random.uniform(k_b1, (2,), jnp.float32, -bound, bound)
    w2 = jax.random.uniform(k_w2, (2, 2), jnp.float32, -bound, bound)
    b2 = jax.random.uniform(k_b2, (2,), jnp.float32, -bound, bound)

    def ref(x):
        return jax.nn.sigmoid(jax.nn.sigmoid(x @ w1.T + b1) @ w2.T + b2)

    # 1) The demo's input FloatTensor([0.05, 0.01]) as a single sample.
    x_small = jnp.array([[0.05, 0.01]], dtype=jnp.float32)
    out_small = jax.block_until_ready(net_forward(x_small, w1, b1, w2, b2))
    assert jnp.allclose(out_small, ref(x_small), atol=1e-5), (out_small, ref(x_small))

    # 2) Ragged batch: multi-step grid + tail padding + parity wrap lanes.
    x_big = jax.random.uniform(k_x, (2053, 2), jnp.float32)
    out_big = jax.block_until_ready(net_forward(x_big, w1, b1, w2, b2, block_rows=16))
    assert jnp.allclose(out_big, ref(x_big), atol=1e-5)

    # 3) Block-aligned batch: zero-padding (zero extra HBM copies), grid of 2.
    x_al = jax.random.uniform(k_x, (8192, 2), jnp.float32)
    out_al = jax.block_until_ready(net_forward(x_al, w1, b1, w2, b2))
    assert jnp.allclose(out_al, ref(x_al), atol=1e-5)

    print("KERNEL_OK")
</pallas_src>

<mosaic_0001>
module attributes {stable_mosaic.version = 11 : i64} {
  func.func @_mlp_kernel(%arg0: i32, %arg1: memref<12xf32, #tpu.memory_space<smem>>, %arg2: memref<8x128xf32, #tpu.memory_space<vmem>>, %arg3: memref<8x128xf32, #tpu.memory_space<vmem>>) attributes {dimension_semantics = [#tpu.dimension_semantics<parallel>], iteration_bounds = array<i64: 1>, scalar_prefetch = 0 : i64, scratch_operands = 0 : i64, tpu.core_type = #tpu.core_type<tc>, window_params = [{transform_indices = @transform_0, window_bounds = array<i64: 12>}, {transform_indices = @transform_1, window_bounds = array<i64: 8, 128>}, {transform_indices = @transform_2, window_bounds = array<i64: 8, 128>}]} {
    %c0 = arith.constant 0 : index
    %c0_0 = arith.constant 0 : index
    %0 = vector.load %arg2[%c0, %c0_0] : memref<8x128xf32, #tpu.memory_space<vmem>>, vector<8x128xf32>
    %1 = tpu.iota {dimensions = array<i32: 1>} : vector<1x128xi32>
    %c1_i32 = arith.constant 1 : i32
    %2 = vector.broadcast %c1_i32 : i32 to vector<1x128xi32>
    %3 = arith.andi %1, %2 : vector<1x128xi32>
    %c0_i32 = arith.constant 0 : i32
    %4 = vector.broadcast %c0_i32 : i32 to vector<1x128xi32>
    %5 = arith.cmpi eq, %3, %4 : vector<1x128xi32>
    %c1_i32_1 = arith.constant 1 : i32
    %6 = vector.broadcast %c1_i32_1 : i32 to vector<1x128xi32>
    %7 = arith.xori %1, %6 : vector<1x128xi32>
    %c1_i32_2 = arith.constant 1 : i32
    %8 = tpu.dynamic_rotate %1 by %c1_i32_2 dim 1 : vector<1x128xi32>, i32 -> vector<1x128xi32>
    %9 = arith.cmpi eq, %8, %7 : vector<1x128xi32>
    %c0_3 = arith.constant 0 : index
    %10 = memref.load %arg1[%c0_3] : memref<12xf32, #tpu.memory_space<smem>>
    %c3 = arith.constant 3 : index
    %11 = memref.load %arg1[%c3] : memref<12xf32, #tpu.memory_space<smem>>
    %12 = vector.broadcast %10 : f32 to vector<1x128xf32>
    %13 = vector.broadcast %11 : f32 to vector<1x128xf32>
    %14 = arith.select %5, %12, %13 : vector<1x128xi1>, vector<1x128xf32>
    %c1 = arith.constant 1 : index
    %15 = memref.load %arg1[%c1] : memref<12xf32, #tpu.memory_space<smem>>
    %c2 = arith.constant 2 : index
    %16 = memref.load %arg1[%c2] : memref<12xf32, #tpu.memory_space<smem>>
    %17 = vector.broadcast %15 : f32 to vector<1x128xf32>
    %18 = vector.broadcast %16 : f32 to vector<1x128xf32>
    %19 = arith.select %5, %17, %18 : vector<1x128xi1>, vector<1x128xf32>
    %c4 = arith.constant 4 : index
    %20 = memref.load %arg1[%c4] : memref<12xf32, #tpu.memory_space<smem>>
    %c5 = arith.constant 5 : index
    %21 = memref.load %arg1[%c5] : memref<12xf32, #tpu.memory_space<smem>>
    %22 = vector.broadcast %20 : f32 to vector<1x128xf32>
    %23 = vector.broadcast %21 : f32 to vector<1x128xf32>
    %24 = arith.select %5, %22, %23 : vector<1x128xi1>, vector<1x128xf32>
    %c6 = arith.constant 6 : index
    %25 = memref.load %arg1[%c6] : memref<12xf32, #tpu.memory_space<smem>>
    %c9 = arith.constant 9 : index
    %26 = memref.load %arg1[%c9] : memref<12xf32, #tpu.memory_space<smem>>
    %27 = vector.broadcast %25 : f32 to vector<1x128xf32>
    %28 = vector.broadcast %26 : f32 to vector<1x128xf32>
    %29 = arith.select %5, %27, %28 : vector<1x128xi1>, vector<1x128xf32>
    %c7 = arith.constant 7 : index
    %30 = memref.load %arg1[%c7] : memref<12xf32, #tpu.memory_space<smem>>
    %c8 = arith.constant 8 : index
    %31 = memref.load %arg1[%c8] : memref<12xf32, #tpu.memory_space<smem>>
    %32 = vector.broadcast %30 : f32 to vector<1x128xf32>
    %33 = vector.broadcast %31 : f32 to vector<1x128xf32>
    %34 = arith.select %5, %32, %33 : vector<1x128xi1>, vector<1x128xf32>
    %c10 = arith.constant 10 : index
    %35 = memref.load %arg1[%c10] : memref<12xf32, #tpu.memory_space<smem>>
    %c11 = arith.constant 11 : index
    %36 = memref.load %arg1[%c11] : memref<12xf32, #tpu.memory_space<smem>>
    %37 = vector.broadcast %35 : f32 to vector<1x128xf32>
    %38 = vector.broadcast %36 : f32 to vector<1x128xf32>
    %39 = arith.select %5, %37, %38 : vector<1x128xi1>, vector<1x128xf32>
    %40 = vector.broadcast %14 : vector<1x128xf32> to vector<8x128xf32>
    %41 = arith.mulf %40, %0 : vector<8x128xf32>
    %c1_i32_4 = arith.constant 1 : i32
    %42 = tpu.dynamic_rotate %0 by %c1_i32_4 dim 1 : vector<8x128xf32>, i32 -> vector<8x128xf32>
    %c127_i32 = arith.constant 127 : i32
    %43 = tpu.dynamic_rotate %0 by %c127_i32 dim 1 : vector<8x128xf32>, i32 -> vector<8x128xf32>
    %44 = vector.shape_cast %9 : vector<1x128xi1> to vector<1x128xi1>
    %45 = vector.broadcast %44 : vector<1x128xi1> to vector<8x128xi1>
    %46 = arith.select %45, %42, %43 : vector<8x128xi1>, vector<8x128xf32>
    %47 = vector.broadcast %19 : vector<1x128xf32> to vector<8x128xf32>
    %48 = arith.mulf %47, %46 : vector<8x128xf32>
    %49 = arith.addf %41, %48 : vector<8x128xf32>
    %50 = vector.broadcast %24 : vector<1x128xf32> to vector<8x128xf32>
    %51 = arith.addf %49, %50 : vector<8x128xf32>
    %52 = math.tanh %51 : vector<8x128xf32>
    %53 = vector.broadcast %29 : vector<1x128xf32> to vector<8x128xf32>
    %54 = arith.mulf %53, %52 : vector<8x128xf32>
    %c1_i32_5 = arith.constant 1 : i32
    %55 = tpu.dynamic_rotate %52 by %c1_i32_5 dim 1 : vector<8x128xf32>, i32 -> vector<8x128xf32>
    %c127_i32_6 = arith.constant 127 : i32
    %56 = tpu.dynamic_rotate %52 by %c127_i32_6 dim 1 : vector<8x128xf32>, i32 -> vector<8x128xf32>
    %57 = vector.shape_cast %9 : vector<1x128xi1> to vector<1x128xi1>
    %58 = vector.broadcast %57 : vector<1x128xi1> to vector<8x128xi1>
    %59 = arith.select %58, %55, %56 : vector<8x128xi1>, vector<8x128xf32>
    %60 = vector.broadcast %34 : vector<1x128xf32> to vector<8x128xf32>
    %61 = arith.mulf %60, %59 : vector<8x128xf32>
    %62 = arith.addf %54, %61 : vector<8x128xf32>
    %63 = vector.broadcast %39 : vector<1x128xf32> to vector<8x128xf32>
    %64 = arith.addf %62, %63 : vector<8x128xf32>
    %65 = math.tanh %64 : vector<8x128xf32>
    %cst = arith.constant 5.000000e-01 : f32
    %66 = vector.broadcast %cst : f32 to vector<8x128xf32>
    %67 = arith.mulf %66, %65 : vector<8x128xf32>
    %cst_7 = arith.constant 5.000000e-01 : f32
    %68 = vector.broadcast %cst_7 : f32 to vector<8x128xf32>
    %69 = arith.addf %67, %68 : vector<8x128xf32>
    %c0_8 = arith.constant 0 : index
    %c0_9 = arith.constant 0 : index
    %70 = vector.load %arg3[%c0_8, %c0_9] : memref<8x128xf32, #tpu.memory_space<vmem>>, vector<8x128xf32>
    tpu.vector_store %arg3[%c0_8, %c0_9], %69 {strides = array<i32>} : memref<8x128xf32, #tpu.memory_space<vmem>>, vector<8x128xf32>,
    return
  }
  func.func @transform_0(%arg0: i32) -> i32 {
    %c0_i32 = arith.constant 0 : i32
    %c0_i32_0 = arith.constant 0 : i32
    return %c0_i32 : i32
  }
  func.func @transform_1(%arg0: i32) -> (i32, i32) {
    %c0_i32 = arith.constant 0 : i32
    %c0_i32_0 = arith.constant 0 : i32
    return %arg0, %c0_i32 : i32, i32
  }
  func.func @transform_2(%arg0: i32) -> (i32, i32) {
    %c0_i32 = arith.constant 0 : i32
    %c0_i32_0 = arith.constant 0 : i32
    return %arg0, %c0_i32 : i32, i32
  }
}

</mosaic_0001>

<llo_original>
// kernel: _net_forward.1
$region0: #{_net_forward.1}
  #allocation0 [shape = 'u32[]', space=smem, size = 0x4, offset = 0x4, fixed_abs, tag = 'smem constant byte address 0x4 - core index']
  #allocation1 [shape = 'u32[72,128]{1,0:T(1,128)}', space=vmem, size = 0x9000, scoped, tag = 'internal scratch']
  %s0 = inlined_call_operand.vmem [shape: f32[12], index: 0, kind: input, shape index: {}]
  %s1 = inlined_call_operand.vmem [shape: f32[8,128], index: 1, kind: input, shape index: {}]
  %s2 = inlined_call_operand.vmem [shape: f32[8,128], index: 2, kind: output, shape index: {}]
  %s3 = sld [smem:[#allocation0]]
  $region22: #{_net_forward.1} parent=0
    _
  %s5 = ssub.s32 1, %s3
  %s6 = scalar_select 0, %s5, %s3
  $region1: #{_net_forward.1} parent=0
    #allocation2 [shape = 'u8[512]{0}', space=smem, size = 0x200, scoped, tag = 'input window, operand 0, single buffered']
    #allocation3 [shape = 's32[1]{0}', space=sflag, size = 0x4, scoped, tag = 'scoped memory for _net_forward.1']
    %7 = vsyncpa [#allocation3], 0
    // Predicated region
    $region2: #{_net_forward.1} parent=1 // pred_check
      _
    $region3: #{_net_forward.1} parent=1 // pred_check_branch
      %9 = sbr.rel (0) target = $region5
    $region4: #{_net_forward.1} parent=1 // pred_region
      %11 = vsyncadd [#allocation3], 0
      %s13 = sshll.u32 %s0, 4
      %s14 = int_to_ptr.vmem [resolvable:$true] %s13
      %16 = dma.vmem_to_smem %s14, 16, [#allocation2], [#allocation3]
    $region5: #{_net_forward.1} parent=1 // pred_fallthru
      _
    // Predicated region
    $region6: #{_net_forward.1} parent=1 // pred_check
      _
    $region7: #{_net_forward.1} parent=1 // pred_check_branch
      %18 = sbr.rel (0) target = $region9
    $region8: #{_net_forward.1} parent=1 // pred_region
      _
    $region9: #{_net_forward.1} parent=1 // pred_fallthru
      _
    // Predicated region
    $region10: #{_net_forward.1} parent=1 // pred_check
      _
    $region11: #{_net_forward.1} parent=1 // pred_check_branch
      %20 = sbr.rel (0) target = $region13
    $region12: #{_net_forward.1} parent=1 // pred_region
      %22 = dma.done [#allocation3], 16
    $region13: #{_net_forward.1} parent=1 // pred_fallthru
      _
    %23 = sfence
    %v24 = vld [vmem:[%s1] sm:$0xff]
    %v25 = vlaneseq
    %v26 = vand.u32 %v25, 127
    %v27 = vand.u32 %v26, 1
    %vm28 = vcmp.eq.s32.totalorder %v27, 0
    %v29 = vxor.u32 %v26, 1
    %30 = vrot.lane.b32.xlu0 %v26, 1
    %v31 = vpop.permute.xlu0 %30
    %vm32 = vcmp.eq.s32.totalorder %v31, %v29
    %s33 = sld [smem:[#allocation2]]
    %s34 = sld [smem:[#allocation2 + $0x3]]
    %v35 = vstv %s33
    %v36 = vstv %s34
    %v37 = vsel %vm28, %v35, %v36
    %s38 = sld [smem:[#allocation2 + $0x1]]
    %s39 = sld [smem:[#allocation2 + $0x2]]
    %v40 = vstv %s38
    %v41 = vstv %s39
    %v42 = vsel %vm28, %v40, %v41
    %s43 = sld [smem:[#allocation2 + $0x4]]
    %s44 = sld [smem:[#allocation2 + $0x5]]
    %v45 = vstv %s43
    %v46 = vstv %s44
    %v47 = vsel %vm28, %v45, %v46
    %s48 = sld [smem:[#allocation2 + $0x6]]
    %s49 = sld [smem:[#allocation2 + $0x9]]
    %v50 = vstv %s48
    %v51 = vstv %s49
    %v52 = vsel %vm28, %v50, %v51
    %s53 = sld [smem:[#allocation2 + $0x7]]
    %s54 = sld [smem:[#allocation2 + $0x8]]
    %v55 = vstv %s53
    %v56 = vstv %s54
    %v57 = vsel %vm28, %v55, %v56
    %s58 = sld [smem:[#allocation2 + $0xa]]
    %s59 = sld [smem:[#allocation2 + $0xb]]
    %v60 = vstv %s58
    %v61 = vstv %s59
    %v62 = vsel %vm28, %v60, %v61
    %v63 = vmul.f32 %v37, %v24
    %64 = vrot.lane.b32.xlu0 %v24, 1
    %v65 = vpop.permute.xlu0 %64
    %66 = vrot.lane.b32.xlu0 %v24, 127
    %v67 = vpop.permute.xlu0 %66
    %v68 = vsel %vm32, 1, 0
    %v69 = vperm.slane %v68, 0
    %vm70 = vcmp.eq.s32.totalorder %v69, 1
    %v71 = vsel %vm70, %v65, %v67
    %v72 = vmul.f32 %v42, %v71
    %v73 = vadd.f32 %v63, %v72
    %v74 = vadd.f32 %v73, %v47
    %v75 = vtanh.pop %v74
    %v76 = vmul.f32 %v52, %v75
    %77 = vrot.lane.b32.xlu0 %v75, 1
    %v78 = vpop.permute.xlu0 %77
    %79 = vrot.lane.b32.xlu0 %v75, 127
    %v80 = vpop.permute.xlu0 %79
    %v81 = vsel %vm70, %v78, %v80
    %v82 = vmul.f32 %v57, %v81
    %v83 = vadd.f32 %v76, %v82
    %v84 = vadd.f32 %v83, %v62
    %v85 = vtanh.pop %v84
    %v86 = vmul.f32 %v85, 0.5
    %v87 = vadd.f32 %v86, 0.5
    %88 = vst [vmem:[%s2] sm:$0xff] %v87
    // Predicated region
    $region14: #{_net_forward.1} parent=1 // pred_check
      _
    $region15: #{_net_forward.1} parent=1 // pred_check_branch
      %90 = sbr.rel (0) target = $region17
    $region16: #{_net_forward.1} parent=1 // pred_region
      _
    $region17: #{_net_forward.1} parent=1 // pred_fallthru
      _
    // Predicated region
    $region18: #{_net_forward.1} parent=1 // pred_check
      _
    $region19: #{_net_forward.1} parent=1 // pred_check_branch
      %92 = sbr.rel (0) target = $region21
    $region20: #{_net_forward.1} parent=1 // pred_region
      _
    $region21: #{_net_forward.1} parent=1 // pred_fallthru
      _
    %93 = vsyncpa [#allocation3], 1

</llo_original>
